<compile_context>
chip_gen: v7x
topology: tpu7x:2x2x1
jax: 0.10.0
libtpu: 0.0.40
codegen_flags: <defaults>
</compile_context>

<pallas_src>
import math

import jax
import jax.numpy as jnp
import numpy as np
from jax.experimental import pallas as pl
from jax.experimental.pallas import tpu as pltpu


def _round_up(x, m):
    return ((x + m - 1) // m) * m


def _embed_kernel(xp_ref, tm_ref,
                  wf_ref, bf_ref, w0b_ref,
                  w1_ref, b1_ref,
                  w2_ref, b2_ref,
                  wo_ref, bo_ref,
                  out_ref):
    f32 = jnp.float32
    bf16 = jnp.bfloat16
    # Fused Poiemb projection + fc0:
    #   sigmoid( xp @ (wc@w0a)  +  time @ w0b  +  (bc@w0a + b0) )
    h = jax.nn.sigmoid(
        jnp.dot(xp_ref[...], wf_ref[...], preferred_element_type=f32)
        + jnp.dot(tm_ref[...].astype(bf16), w0b_ref[...], preferred_element_type=f32)
        + bf_ref[...])
    # fc1, residual add, fc2 (bf16 MXU operands, f32 accumulation + activations)
    h1 = jax.nn.sigmoid(
        jnp.dot(h.astype(bf16), w1_ref[...], preferred_element_type=f32) + b1_ref[...])
    h = jax.nn.sigmoid(
        jnp.dot((h1 + h).astype(bf16), w2_ref[...], preferred_element_type=f32) + b2_ref[...])
    # fc_out: wo is padded on rows only -> result is already (tile, d_model), no slice.
    out = jnp.dot(h.astype(bf16), wo_ref[...], preferred_element_type=f32) + bo_ref[...]
    out_ref[...] = out.astype(out_ref.dtype)


def data_embedding_poi(x, time, params, *, t_patch, patch, tile_m=1024):
    N, c_in, T, H, W = x.shape
    d_model = params["wc"].shape[1]
    Tp, Hp, Wp = T // t_patch, H // patch, W // patch
    L = Tp * Hp * Wp
    K = c_in * t_patch * patch * patch
    rows = N * L
    d_pad = _round_up(d_model, 128)
    bf16, f32 = jnp.bfloat16, jnp.float32

    # ---- fold the conv projection into fc0 (exact affine composition, in f32) ----
    wf = params["wc"] @ params["w0a"]                    # (K, d_model)
    bfold = params["bc"] @ params["w0a"] + params["b0"]  # (1, d_model)

    pc = d_pad - d_model
    pad_c = lambda a: jnp.pad(a, ((0, 0), (0, pc)))      # pad output columns
    pad_rc = lambda a: jnp.pad(a, ((0, pc), (0, pc)))    # pad rows + columns
    pad_r = lambda a: jnp.pad(a, ((0, pc), (0, 0)))      # pad rows only (fc_out)

    # Padding invariant (load-bearing): the pad columns of h are sigmoid(0)=0.5, so every
    # downstream weight (w1, w2, wo) MUST have zero-padded ROWS for those 0.5s to vanish.
    wf_p = pad_c(wf).astype(bf16)
    bf_p = pad_c(bfold).astype(f32)
    w0b_p = pad_c(params["w0b"]).astype(bf16)
    w1_p = pad_rc(params["w1"]).astype(bf16)
    b1_p = pad_c(params["b1"]).astype(f32)
    w2_p = pad_rc(params["w2"]).astype(bf16)
    b2_p = pad_c(params["b2"]).astype(f32)
    wo_p = pad_r(params["wo"]).astype(bf16)              # (d_pad, d_model)
    bo_p = params["bo"].astype(f32)                      # (1, d_model)
    weights = (wf_p, bf_p, w0b_p, w1_p, b1_p, w2_p, b2_p, wo_p, bo_p)
    weight_bytes = sum(int(a.size) * a.dtype.itemsize for a in weights)

    # ---- patch extraction -> (rows, K); cast to bf16 BEFORE the transpose so the one
    #      im2col pass moves half the bytes. K ordered (c_in, tp, p, p), rows (n,t',h',w').
    xp = x.astype(bf16).reshape(N, c_in, Tp, t_patch, Hp, patch, Wp, patch)
    xp = xp.transpose(0, 2, 4, 6, 1, 3, 5, 7).reshape(rows, K)
    tm = time.reshape(rows, d_model)                     # pure reshape, stays f32

    # ---- tile sizing: large tiles (grid overhead amortization), honest VMEM model ----
    tile = max(16, min(tile_m, _round_up(rows, 16)))

    def vmem_est(t):
        stream = t * (K * 2 + d_model * 4 + d_model * 4)  # xp bf16, tm f32, out f32
        interm = 4 * t * d_pad * 4                        # f32 (tile,d_pad) temporaries
        return 2 * stream + interm + 2 * weight_bytes     # streams double-buffered

    budget = 24 << 20  # conservative: fits default scoped VMEM on v5e/v6e/v7x
    while tile > 64 and vmem_est(tile) > budget:
        tile = _round_up(tile // 2, 16)

    # Best-effort: keep the grid an even number of steps (>1) so v7x's two TCs split evenly.
    grid_n = pl.cdiv(rows, tile)
    if grid_n > 1 and grid_n % 2 == 1:
        tile = max(16, _round_up(pl.cdiv(rows, grid_n + 1), 16))
        grid_n = pl.cdiv(rows, tile)

    vmem_limit = int(min(32 << 20, max(16 << 20, 2 * vmem_est(tile))))
    grid = (grid_n,)

    def full2(a):
        return pl.BlockSpec(a.shape, lambda i: (0, 0))

    flops = 2 * rows * (K * d_pad + d_model * d_pad + 2 * d_pad * d_pad + d_pad * d_model)
    cost = pl.CostEstimate(
        flops=int(flops),
        transcendentals=int(3 * rows * d_pad),
        bytes_accessed=int(xp.size * 2 + tm.size * 4 + rows * d_model * 4 + weight_bytes),
    )

    out = pl.pallas_call(
        _embed_kernel,
        out_shape=jax.ShapeDtypeStruct((rows, d_model), jnp.float32),
        grid_spec=pltpu.PrefetchScalarGridSpec(
            num_scalar_prefetch=0,
            grid=grid,
            in_specs=[
                pl.BlockSpec((tile, K), lambda i: (i, 0)),        # patch matrix (bf16)
                pl.BlockSpec((tile, d_model), lambda i: (i, 0)),  # time features (f32)
                full2(wf_p), full2(bf_p), full2(w0b_p),
                full2(w1_p), full2(b1_p),
                full2(w2_p), full2(b2_p),
                full2(wo_p), full2(bo_p),
            ],
            out_specs=pl.BlockSpec((tile, d_model), lambda i: (i, 0)),
        ),
        compiler_params=pltpu.CompilerParams(
            dimension_semantics=("parallel",),
            vmem_limit_bytes=vmem_limit,
            allow_input_fusion=[True, True] + [False] * 9,
        ),
        cost_estimate=cost,
    )(xp, tm, *weights)

    return out.reshape(N, L, d_model)


def init_params(key, c_in, d_model, t_patch, patch):
    K = c_in * t_patch * patch * patch
    ks = jax.random.split(key, 12)

    def linear(kw, kb, fan_in, fan_out):
        bound = 1.0 / math.sqrt(fan_in)
        w = jax.random.uniform(kw, (fan_in, fan_out), jnp.float32, -bound, bound)
        b = jax.random.uniform(kb, (1, fan_out), jnp.float32, -bound, bound)
        return w, b

    # Conv3d weight: kaiming_normal(fan_in, leaky_relu) -> std = gain / sqrt(fan_in)
    gain = math.sqrt(2.0 / (1.0 + 0.01 ** 2))
    wc = jax.random.normal(ks[0], (K, d_model), jnp.float32) * (gain / math.sqrt(K))
    bc = jax.random.uniform(ks[1], (1, d_model), jnp.float32,
                            -1.0 / math.sqrt(K), 1.0 / math.sqrt(K))
    # fc0: Linear(2*d_model, d_model), split input-wise into (poi | time) halves
    w0, b0 = linear(ks[2], ks[3], 2 * d_model, d_model)
    w0a, w0b = w0[:d_model, :], w0[d_model:, :]
    w1, b1 = linear(ks[4], ks[5], d_model, d_model)
    w2, b2 = linear(ks[6], ks[7], d_model, d_model)
    wo, bo = linear(ks[8], ks[9], d_model, d_model)
    return dict(wc=wc, bc=bc, w0a=w0a, w0b=w0b, b0=b0,
                w1=w1, b1=b1, w2=w2, b2=b2, wo=wo, bo=bo)


def reference(x, time, params, *, t_patch, patch):
    """Plain-JAX f32 reference mirroring the PyTorch forward exactly."""
    N, c_in, T, H, W = x.shape
    d_model = params["wc"].shape[1]
    wc5 = params["wc"].T.reshape(d_model, c_in, t_patch, patch, patch)
    y = jax.lax.conv_general_dilated(
        x, wc5, window_strides=(t_patch, patch, patch), padding="VALID",
        dimension_numbers=("NCDHW", "OIDHW", "NCDHW"))
    y = y + params["bc"].reshape(1, d_model, 1, 1, 1)
    Tp, Hp, Wp = y.shape[2], y.shape[3], y.shape[4]
    y = y.reshape(N, d_model, Tp, Hp * Wp)
    y = jnp.einsum("ncts->ntsc", y)
    poi = y.reshape(N, -1, d_model)
    emb = jnp.concatenate([poi, time], axis=-1)
    w0 = jnp.concatenate([params["w0a"], params["w0b"]], axis=0)
    h = jax.nn.sigmoid(emb @ w0 + params["b0"])
    h1 = jax.nn.sigmoid(h @ params["w1"] + params["b1"])
    h = jax.nn.sigmoid((h1 + h) @ params["w2"] + params["b2"])
    return h @ params["wo"] + params["bo"]


if __name__ == "__main__":
    key = jax.random.PRNGKey(0)
    k_x, k_t, k_p = jax.random.split(key, 3)

    # Small shapes consistent with the module (args.t_patch_size=2, args.patch_size=4)
    N, c_in, T, H, W = 2, 4, 8, 16, 16
    d_model, t_patch, patch = 32, 2, 4
    L = (T // t_patch) * (H // patch) * (W // patch)  # 4 * 4 * 4 = 64 tokens

    x = jax.random.normal(k_x, (N, c_in, T, H, W), jnp.float32)
    time = jax.random.normal(k_t, (N, L, d_model), jnp.float32)
    params = init_params(k_p, c_in, d_model, t_patch, patch)

    out = data_embedding_poi(x, time, params, t_patch=t_patch, patch=patch)
    out = jax.block_until_ready(out)

    ref = jax.block_until_ready(reference(x, time, params, t_patch=t_patch, patch=patch))
    assert out.shape == (N, L, d_model), out.shape
    # bf16 MXU operands + folded conv/fc0 -> compare against the f32 reference with
    # bf16-level tolerance (output itself stays f32).
    np.testing.assert_allclose(np.asarray(out), np.asarray(ref), rtol=3e-2, atol=3e-2)

    print("KERNEL_OK")
</pallas_src>

<mosaic_0001>
module attributes {stable_mosaic.version = 11 : i64} {
  func.func @_embed_kernel(%arg0: i32, %arg1: memref<128x128xbf16, #tpu.memory_space<vmem>>, %arg2: memref<128x32xf32, #tpu.memory_space<vmem>>, %arg3: memref<128x128xbf16, #tpu.memory_space<vmem>>, %arg4: memref<1x128xf32, #tpu.memory_space<vmem>>, %arg5: memref<32x128xbf16, #tpu.memory_space<vmem>>, %arg6: memref<128x128xbf16, #tpu.memory_space<vmem>>, %arg7: memref<1x128xf32, #tpu.memory_space<vmem>>, %arg8: memref<128x128xbf16, #tpu.memory_space<vmem>>, %arg9: memref<1x128xf32, #tpu.memory_space<vmem>>, %arg10: memref<128x32xbf16, #tpu.memory_space<vmem>>, %arg11: memref<1x32xf32, #tpu.memory_space<vmem>>, %arg12: memref<128x32xf32, #tpu.memory_space<vmem>>) attributes {dimension_semantics = [#tpu.dimension_semantics<parallel>], iteration_bounds = array<i64: 1>, scalar_prefetch = 0 : i64, scratch_operands = 0 : i64, tpu.core_type = #tpu.core_type<tc>, window_params = [{transform_indices = @transform_0, window_bounds = array<i64: 128, 128>}, {transform_indices = @transform_1, window_bounds = array<i64: 128, 32>}, {pipeline_mode = #tpu.pipeline_mode<synchronous>, transform_indices = @transform_2, window_bounds = array<i64: 128, 128>}, {pipeline_mode = #tpu.pipeline_mode<synchronous>, transform_indices = @transform_3, window_bounds = array<i64: 1, 128>}, {pipeline_mode = #tpu.pipeline_mode<synchronous>, transform_indices = @transform_4, window_bounds = array<i64: 32, 128>}, {pipeline_mode = #tpu.pipeline_mode<synchronous>, transform_indices = @transform_5, window_bounds = array<i64: 128, 128>}, {pipeline_mode = #tpu.pipeline_mode<synchronous>, transform_indices = @transform_6, window_bounds = array<i64: 1, 128>}, {pipeline_mode = #tpu.pipeline_mode<synchronous>, transform_indices = @transform_7, window_bounds = array<i64: 128, 128>}, {pipeline_mode = #tpu.pipeline_mode<synchronous>, transform_indices = @transform_8, window_bounds = array<i64: 1, 128>}, {pipeline_mode = #tpu.pipeline_mode<synchronous>, transform_indices = @transform_9, window_bounds = array<i64: 128, 32>}, {pipeline_mode = #tpu.pipeline_mode<synchronous>, transform_indices = @transform_10, window_bounds = array<i64: 1, 32>}, {transform_indices = @transform_11, window_bounds = array<i64: 128, 32>}]} {
    %c0 = arith.constant 0 : index
    %c0_0 = arith.constant 0 : index
    %0 = vector.load %arg1[%c0, %c0_0] : memref<128x128xbf16, #tpu.memory_space<vmem>>, vector<128x128xbf16>
    %c0_1 = arith.constant 0 : index
    %c0_2 = arith.constant 0 : index
    %1 = vector.load %arg3[%c0_1, %c0_2] : memref<128x128xbf16, #tpu.memory_space<vmem>>, vector<128x128xbf16>
    %cst = arith.constant dense<0.000000e+00> : vector<128x128xf32>
    %2 = tpu.matmul %0, %1, %cst {dimension_numbers = #tpu.dot_dimension_numbers<[1], [0], [0], [1], [0, 0, 1, 1], [], []>} : vector<128x128xbf16>, vector<128x128xbf16>, vector<128x128xf32> -> vector<128x128xf32>
    %c0_3 = arith.constant 0 : index
    %c0_4 = arith.constant 0 : index
    %3 = vector.load %arg2[%c0_3, %c0_4] : memref<128x32xf32, #tpu.memory_space<vmem>>, vector<128x32xf32>
    %4 = arith.truncf %3 : vector<128x32xf32> to vector<128x32xbf16>
    %c0_5 = arith.constant 0 : index
    %c0_6 = arith.constant 0 : index
    %5 = vector.load %arg5[%c0_5, %c0_6] : memref<32x128xbf16, #tpu.memory_space<vmem>>, vector<32x128xbf16>
    %cst_7 = arith.constant dense<0.000000e+00> : vector<128x128xf32>
    %6 = tpu.matmul %4, %5, %cst_7 {dimension_numbers = #tpu.dot_dimension_numbers<[1], [0], [0], [1], [0, 0, 1, 1], [], []>} : vector<128x32xbf16>, vector<32x128xbf16>, vector<128x128xf32> -> vector<128x128xf32>
    %7 = arith.addf %2, %6 : vector<128x128xf32>
    %c0_8 = arith.constant 0 : index
    %c0_9 = arith.constant 0 : index
    %8 = vector.load %arg4[%c0_8, %c0_9] : memref<1x128xf32, #tpu.memory_space<vmem>>, vector<1x128xf32>
    %9 = vector.broadcast %8 : vector<1x128xf32> to vector<128x128xf32>
    %10 = arith.addf %7, %9 : vector<128x128xf32>
    %11 = arith.negf %10 : vector<128x128xf32>
    %12 = math.exp %11 : vector<128x128xf32>
    %cst_10 = arith.constant 1.000000e+00 : f32
    %13 = vector.broadcast %cst_10 : f32 to vector<128x128xf32>
    %14 = arith.addf %13, %12 : vector<128x128xf32>
    %15 = arith.divf %13, %14 : vector<128x128xf32>
    %16 = arith.truncf %15 : vector<128x128xf32> to vector<128x128xbf16>
    %c0_11 = arith.constant 0 : index
    %c0_12 = arith.constant 0 : index
    %17 = vector.load %arg6[%c0_11, %c0_12] : memref<128x128xbf16, #tpu.memory_space<vmem>>, vector<128x128xbf16>
    %cst_13 = arith.constant dense<0.000000e+00> : vector<128x128xf32>
    %18 = tpu.matmul %16, %17, %cst_13 {dimension_numbers = #tpu.dot_dimension_numbers<[1], [0], [0], [1], [0, 0, 1, 1], [], []>} : vector<128x128xbf16>, vector<128x128xbf16>, vector<128x128xf32> -> vector<128x128xf32>
    %c0_14 = arith.constant 0 : index
    %c0_15 = arith.constant 0 : index
    %19 = vector.load %arg7[%c0_14, %c0_15] : memref<1x128xf32, #tpu.memory_space<vmem>>, vector<1x128xf32>
    %20 = vector.broadcast %19 : vector<1x128xf32> to vector<128x128xf32>
    %21 = arith.addf %18, %20 : vector<128x128xf32>
    %22 = arith.negf %21 : vector<128x128xf32>
    %23 = math.exp %22 : vector<128x128xf32>
    %cst_16 = arith.constant 1.000000e+00 : f32
    %24 = vector.broadcast %cst_16 : f32 to vector<128x128xf32>
    %25 = arith.addf %24, %23 : vector<128x128xf32>
    %26 = arith.divf %24, %25 : vector<128x128xf32>
    %27 = arith.addf %26, %15 : vector<128x128xf32>
    %28 = arith.truncf %27 : vector<128x128xf32> to vector<128x128xbf16>
    %c0_17 = arith.constant 0 : index
    %c0_18 = arith.constant 0 : index
    %29 = vector.load %arg8[%c0_17, %c0_18] : memref<128x128xbf16, #tpu.memory_space<vmem>>, vector<128x128xbf16>
    %cst_19 = arith.constant dense<0.000000e+00> : vector<128x128xf32>
    %30 = tpu.matmul %28, %29, %cst_19 {dimension_numbers = #tpu.dot_dimension_numbers<[1], [0], [0], [1], [0, 0, 1, 1], [], []>} : vector<128x128xbf16>, vector<128x128xbf16>, vector<128x128xf32> -> vector<128x128xf32>
    %c0_20 = arith.constant 0 : index
    %c0_21 = arith.constant 0 : index
    %31 = vector.load %arg9[%c0_20, %c0_21] : memref<1x128xf32, #tpu.memory_space<vmem>>, vector<1x128xf32>
    %32 = vector.broadcast %31 : vector<1x128xf32> to vector<128x128xf32>
    %33 = arith.addf %30, %32 : vector<128x128xf32>
    %34 = arith.negf %33 : vector<128x128xf32>
    %35 = math.exp %34 : vector<128x128xf32>
    %cst_22 = arith.constant 1.000000e+00 : f32
    %36 = vector.broadcast %cst_22 : f32 to vector<128x128xf32>
    %37 = arith.addf %36, %35 : vector<128x128xf32>
    %38 = arith.divf %36, %37 : vector<128x128xf32>
    %39 = arith.truncf %38 : vector<128x128xf32> to vector<128x128xbf16>
    %c0_23 = arith.constant 0 : index
    %c0_24 = arith.constant 0 : index
    %40 = vector.load %arg10[%c0_23, %c0_24] : memref<128x32xbf16, #tpu.memory_space<vmem>>, vector<128x32xbf16>
    %cst_25 = arith.constant dense<0.000000e+00> : vector<128x32xf32>
    %41 = tpu.matmul %39, %40, %cst_25 {dimension_numbers = #tpu.dot_dimension_numbers<[1], [0], [0], [1], [0, 0, 1, 1], [], []>} : vector<128x128xbf16>, vector<128x32xbf16>, vector<128x32xf32> -> vector<128x32xf32>
    %c0_26 = arith.constant 0 : index
    %c0_27 = arith.constant 0 : index
    %42 = vector.load %arg11[%c0_26, %c0_27] : memref<1x32xf32, #tpu.memory_space<vmem>>, vector<1x32xf32>
    %43 = vector.broadcast %42 : vector<1x32xf32> to vector<128x32xf32>
    %44 = arith.addf %41, %43 : vector<128x32xf32>
    %c0_28 = arith.constant 0 : index
    %c0_29 = arith.constant 0 : index
    %45 = vector.load %arg12[%c0_28, %c0_29] : memref<128x32xf32, #tpu.memory_space<vmem>>, vector<128x32xf32>
    tpu.vector_store %arg12[%c0_28, %c0_29], %44 {strides = array<i32>} : memref<128x32xf32, #tpu.memory_space<vmem>>, vector<128x32xf32>,
    return
  }
  func.func @transform_0(%arg0: i32) -> (i32, i32) {
    %c0_i32 = arith.constant 0 : i32
    %c0_i32_0 = arith.constant 0 : i32
    return %arg0, %c0_i32 : i32, i32
  }
  func.func @transform_1(%arg0: i32) -> (i32, i32) {
    %c0_i32 = arith.constant 0 : i32
    %c0_i32_0 = arith.constant 0 : i32
    return %arg0, %c0_i32 : i32, i32
  }
  func.func @transform_2(%arg0: i32) -> (i32, i32) {
    %c0_i32 = arith.constant 0 : i32
    %c0_i32_0 = arith.constant 0 : i32
    %c0_i32_1 = arith.constant 0 : i32
    return %c0_i32, %c0_i32_0 : i32, i32
  }
  func.func @transform_3(%arg0: i32) -> (i32, i32) {
    %c0_i32 = arith.constant 0 : i32
    %c0_i32_0 = arith.constant 0 : i32
    %c0_i32_1 = arith.constant 0 : i32
    return %c0_i32, %c0_i32_0 : i32, i32
  }
  func.func @transform_4(%arg0: i32) -> (i32, i32) {
    %c0_i32 = arith.constant 0 : i32
    %c0_i32_0 = arith.constant 0 : i32
    %c0_i32_1 = arith.constant 0 : i32
    return %c0_i32, %c0_i32_0 : i32, i32
  }
  func.func @transform_5(%arg0: i32) -> (i32, i32) {
    %c0_i32 = arith.constant 0 : i32
    %c0_i32_0 = arith.constant 0 : i32
    %c0_i32_1 = arith.constant 0 : i32
    return %c0_i32, %c0_i32_0 : i32, i32
  }
  func.func @transform_6(%arg0: i32) -> (i32, i32) {
    %c0_i32 = arith.constant 0 : i32
    %c0_i32_0 = arith.constant 0 : i32
    %c0_i32_1 = arith.constant 0 : i32
    return %c0_i32, %c0_i32_0 : i32, i32
  }
  func.func @transform_7(%arg0: i32) -> (i32, i32) {
    %c0_i32 = arith.constant 0 : i32
    %c0_i32_0 = arith.constant 0 : i32
    %c0_i32_1 = arith.constant 0 : i32
    return %c0_i32, %c0_i32_0 : i32, i32
  }
  func.func @transform_8(%arg0: i32) -> (i32, i32) {
    %c0_i32 = arith.constant 0 : i32
    %c0_i32_0 = arith.constant 0 : i32
    %c0_i32_1 = arith.constant 0 : i32
    return %c0_i32, %c0_i32_0 : i32, i32
  }
  func.func @transform_9(%arg0: i32) -> (i32, i32) {
    %c0_i32 = arith.constant 0 : i32
    %c0_i32_0 = arith.constant 0 : i32
    %c0_i32_1 = arith.constant 0 : i32
    return %c0_i32, %c0_i32_0 : i32, i32
  }
  func.func @transform_10(%arg0: i32) -> (i32, i32) {
    %c0_i32 = arith.constant 0 : i32
    %c0_i32_0 = arith.constant 0 : i32
    %c0_i32_1 = arith.constant 0 : i32
    return %c0_i32, %c0_i32_0 : i32, i32
  }
  func.func @transform_11(%arg0: i32) -> (i32, i32) {
    %c0_i32 = arith.constant 0 : i32
    %c0_i32_0 = arith.constant 0 : i32
    return %arg0, %c0_i32 : i32, i32
  }
}

</mosaic_0001>

<llo_original>
// kernel: tpu_custom_call.1
$region0: #{tpu_custom_call.1}
  #allocation0 [shape = 'u32[]', space=smem, size = 0x4, offset = 0x4, fixed_abs, tag = 'smem constant byte address 0x4 - core index']
  #allocation1 [shape = 'u32[144,128]{1,0:T(1,128)}', space=vmem, size = 0x12000, scoped, tag = 'internal scratch']
  %s0 = inlined_call_operand.vmem [shape: bf16[128,128], index: 0, kind: input, shape index: {}]
  %s1 = inlined_call_operand.vmem [shape: f32[128,32], index: 1, kind: input, shape index: {}]
  %s2 = inlined_call_operand.vmem [shape: bf16[128,128], index: 2, kind: input, shape index: {}]
  %s3 = inlined_call_operand.vmem [shape: f32[1,128], index: 3, kind: input, shape index: {}]
  %s4 = inlined_call_operand.hbm [shape: bf16[32,128], index: 4, kind: input, shape index: {}]
  %s5 = inlined_call_operand.vmem [shape: bf16[128,128], index: 5, kind: input, shape index: {}]
  %s6 = inlined_call_operand.vmem [shape: f32[1,128], index: 6, kind: input, shape index: {}]
  %s7 = inlined_call_operand.vmem [shape: bf16[128,128], index: 7, kind: input, shape index: {}]
  %s8 = inlined_call_operand.hbm [shape: f32[1,128], index: 8, kind: input, shape index: {}]
  %s9 = inlined_call_operand.vmem [shape: bf16[128,32], index: 9, kind: input, shape index: {}]
  %s10 = inlined_call_operand.vmem [shape: f32[1,32], index: 10, kind: input, shape index: {}]
  %s11 = inlined_call_operand.vmem [shape: f32[128,32], index: 11, kind: output, shape index: {}]
  %s12 = sld [smem:[#allocation0]]
  $region62: #{tpu_custom_call.1} parent=0
    _
  %s14 = ssub.s32 1, %s12
  %s15 = scalar_select 0, %s14, %s12
  $region1: #{tpu_custom_call.1} parent=0
    #allocation2 [shape = 'u8[8192]{0}', space=vmem, size = 0x2000, scoped, tag = 'input window, operand 4, single buffered']
    #allocation3 [shape = 's32[1]{0}', space=sflag, size = 0x4, scoped, tag = 'scoped memory for tpu_custom_call.1']
    #allocation4 [shape = 'u8[512]{0}', space=vmem, size = 0x400, scoped, tag = 'input window, operand 8, single buffered']
    #allocation5 [shape = 's32[1]{0}', space=sflag, size = 0x4, scoped, tag = 'scoped memory for tpu_custom_call.1']
    %16 = vsyncpa [#allocation3], 0
    %17 = vsyncpa [#allocation5], 0
    // Predicated region
    $region2: #{tpu_custom_call.1} parent=1 // pred_check
      _
    $region3: #{tpu_custom_call.1} parent=1 // pred_check_branch
      %19 = sbr.rel (0) target = $region5
    $region4: #{tpu_custom_call.1} parent=1 // pred_region
      _
    $region5: #{tpu_custom_call.1} parent=1 // pred_fallthru
      _
    // Predicated region
    $region6: #{tpu_custom_call.1} parent=1 // pred_check
      _
    $region7: #{tpu_custom_call.1} parent=1 // pred_check_branch
      %21 = sbr.rel (0) target = $region9
    $region8: #{tpu_custom_call.1} parent=1 // pred_region
      _
    $region9: #{tpu_custom_call.1} parent=1 // pred_fallthru
      _
    // Predicated region
    $region10: #{tpu_custom_call.1} parent=1 // pred_check
      _
    $region11: #{tpu_custom_call.1} parent=1 // pred_check_branch
      %23 = sbr.rel (0) target = $region13
    $region12: #{tpu_custom_call.1} parent=1 // pred_region
      _
    $region13: #{tpu_custom_call.1} parent=1 // pred_fallthru
      _
    // Predicated region
    $region14: #{tpu_custom_call.1} parent=1 // pred_check
      _
    $region15: #{tpu_custom_call.1} parent=1 // pred_check_branch
      %25 = sbr.rel (0) target = $region17
    $region16: #{tpu_custom_call.1} parent=1 // pred_region
      _
    $region17: #{tpu_custom_call.1} parent=1 // pred_fallthru
      _
    // Predicated region
    $region18: #{tpu_custom_call.1} parent=1 // pred_check
      _
    $region19: #{tpu_custom_call.1} parent=1 // pred_check_branch
      %27 = sbr.rel (0) target = $region21
    $region20: #{tpu_custom_call.1} parent=1 // pred_region
      %s29 = ssub.s32 256, 256
      %30 = vsyncadd [#allocation3], %s29
      %s31 = sshll.u32 [#allocation2], 4
      %s32 = int_to_ptr.vmem [resolvable:$true] %s31
      %37 = dma.hbm_to_vmem [thread:$0]  %s4, 256, %s32, [#allocation3], 64, 64, 4
    $region21: #{tpu_custom_call.1} parent=1 // pred_fallthru
      _
    // Predicated region
    $region22: #{tpu_custom_call.1} parent=1 // pred_check
      _
    $region23: #{tpu_custom_call.1} parent=1 // pred_check_branch
      %39 = sbr.rel (0) target = $region25
    $region24: #{tpu_custom_call.1} parent=1 // pred_region
      _
    $region25: #{tpu_custom_call.1} parent=1 // pred_fallthru
      _
    // Predicated region
    $region26: #{tpu_custom_call.1} parent=1 // pred_check
      _
    $region27: #{tpu_custom_call.1} parent=1 // pred_check_branch
      %41 = sbr.rel (0) target = $region29
    $region28: #{tpu_custom_call.1} parent=1 // pred_region
      _
    $region29: #{tpu_custom_call.1} parent=1 // pred_fallthru
      _
    // Predicated region
    $region30: #{tpu_custom_call.1} parent=1 // pred_check
      _
    $region31: #{tpu_custom_call.1} parent=1 // pred_check_branch
      %43 = sbr.rel (0) target = $region33
    $region32: #{tpu_custom_call.1} parent=1 // pred_region
      _
    $region33: #{tpu_custom_call.1} parent=1 // pred_fallthru
      _
    // Predicated region
    $region34: #{tpu_custom_call.1} parent=1 // pred_check
      _
    $region35: #{tpu_custom_call.1} parent=1 // pred_check_branch
      %45 = sbr.rel (0) target = $region37
    $region36: #{tpu_custom_call.1} parent=1 // pred_region
      %s47 = ssub.s32 16, 16
      %48 = vsyncadd [#allocation5], %s47
      %s50 = sshll.u32 [#allocation4], 4
      %s51 = int_to_ptr.vmem [resolvable:$true] %s50
      %53 = dma.hbm_to_vmem [thread:$0]  %s8, 16, %s51, [#allocation5]
    $region37: #{tpu_custom_call.1} parent=1 // pred_fallthru
      _
    // Predicated region
    $region38: #{tpu_custom_call.1} parent=1 // pred_check
      _
    $region39: #{tpu_custom_call.1} parent=1 // pred_check_branch
      %55 = sbr.rel (0) target = $region41
    $region40: #{tpu_custom_call.1} parent=1 // pred_region
      _
    $region41: #{tpu_custom_call.1} parent=1 // pred_fallthru
      _
    // Predicated region
    $region42: #{tpu_custom_call.1} parent=1 // pred_check
      _
    $region43: #{tpu_custom_call.1} parent=1 // pred_check_branch
      %57 = sbr.rel (0) target = $region45
    $region44: #{tpu_custom_call.1} parent=1 // pred_region
      _
    $region45: #{tpu_custom_call.1} parent=1 // pred_fallthru
      _
    // Predicated region
    $region46: #{tpu_custom_call.1} parent=1 // pred_check
      _
    $region47: #{tpu_custom_call.1} parent=1 // pred_check_branch
      %59 = sbr.rel (0) target = $region49
    $region48: #{tpu_custom_call.1} parent=1 // pred_region
      %60 = dma.done [#allocation3], 256
    $region49: #{tpu_custom_call.1} parent=1 // pred_fallthru
      _
    // Predicated region
    $region50: #{tpu_custom_call.1} parent=1 // pred_check
      _
    $region51: #{tpu_custom_call.1} parent=1 // pred_check_branch
      %62 = sbr.rel (0) target = $region53
    $region52: #{tpu_custom_call.1} parent=1 // pred_region
      %63 = dma.done [#allocation5], 16
    $region53: #{tpu_custom_call.1} parent=1 // pred_fallthru
      _
    %v65 = vld [vmem:[%s0] sm:$0xf]
    %v66 = vld [vmem:[%s0 + $0x4] sm:$0xf]
    %v67 = vld [vmem:[%s0 + $0x8] sm:$0xf]
    %v68 = vld [vmem:[%s0 + $0xc] sm:$0xf]
    %v69 = vld [vmem:[%s0 + $0x10] sm:$0xf]
    %v70 = vld [vmem:[%s0 + $0x14] sm:$0xf]
    %v71 = vld [vmem:[%s0 + $0x18] sm:$0xf]
    %v72 = vld [vmem:[%s0 + $0x1c] sm:$0xf]
    %v73 = vld [vmem:[%s0 + $0x20] sm:$0xf]
    %v74 = vld [vmem:[%s0 + $0x24] sm:$0xf]
    %v75 = vld [vmem:[%s0 + $0x28] sm:$0xf]
    %v76 = vld [vmem:[%s0 + $0x2c] sm:$0xf]
    %v77 = vld [vmem:[%s0 + $0x30] sm:$0xf]
    %v78 = vld [vmem:[%s0 + $0x34] sm:$0xf]
    %v79 = vld [vmem:[%s0 + $0x38] sm:$0xf]
    %v80 = vld [vmem:[%s0 + $0x3c] sm:$0xf]
    %v81 = vld [vmem:[%s2] sm:$0xf]
    %v82 = vld [vmem:[%s2 + $0x4] sm:$0xf]
    %v83 = vld [vmem:[%s2 + $0x8] sm:$0xf]
    %v84 = vld [vmem:[%s2 + $0xc] sm:$0xf]
    %v85 = vld [vmem:[%s2 + $0x10] sm:$0xf]
    %v86 = vld [vmem:[%s2 + $0x14] sm:$0xf]
    %v87 = vld [vmem:[%s2 + $0x18] sm:$0xf]
    %v88 = vld [vmem:[%s2 + $0x1c] sm:$0xf]
    %v89 = vld [vmem:[%s2 + $0x20] sm:$0xf]
    %v90 = vld [vmem:[%s2 + $0x24] sm:$0xf]
    %v91 = vld [vmem:[%s2 + $0x28] sm:$0xf]
    %v92 = vld [vmem:[%s2 + $0x2c] sm:$0xf]
    %v93 = vld [vmem:[%s2 + $0x30] sm:$0xf]
    %v94 = vld [vmem:[%s2 + $0x34] sm:$0xf]
    %v95 = vld [vmem:[%s2 + $0x38] sm:$0xf]
    %v96 = vld [vmem:[%s2 + $0x3c] sm:$0xf]
    %v97 = vld [vmem:[%s1] sm:$0xff]
    %v98 = vld [vmem:[%s1 + $0x8] sm:$0xff]
    %v99 = vld [vmem:[%s1 + $0x10] sm:$0xff]
    %v100 = vld [vmem:[%s1 + $0x18] sm:$0xff]
    %v101 = vld [vmem:[%s1 + $0x20] sm:$0xff]
    %v102 = vld [vmem:[%s1 + $0x28] sm:$0xff]
    %v103 = vld [vmem:[%s1 + $0x30] sm:$0xff]
    %v104 = vld [vmem:[%s1 + $0x38] sm:$0xff]
    %v105 = vld [vmem:[%s1 + $0x40] sm:$0xff]
    %v106 = vld [vmem:[%s1 + $0x48] sm:$0xff]
    %v107 = vld [vmem:[%s1 + $0x50] sm:$0xff]
    %v108 = vld [vmem:[%s1 + $0x58] sm:$0xff]
    %v109 = vld [vmem:[%s1 + $0x60] sm:$0xff]
    %v110 = vld [vmem:[%s1 + $0x68] sm:$0xff]
    %v111 = vld [vmem:[%s1 + $0x70] sm:$0xff]
    %v112 = vld [vmem:[%s1 + $0x78] sm:$0xff]
    %v113 = vpack.c.bf16 %v98, %v97
    %v114 = vpack.c.bf16 %v100, %v99
    %v115 = vpack.c.bf16 %v102, %v101
    %v116 = vpack.c.bf16 %v104, %v103
    %v117 = vpack.c.bf16 %v106, %v105
    %v118 = vpack.c.bf16 %v108, %v107
    %v119 = vpack.c.bf16 %v110, %v109
    %v120 = vpack.c.bf16 %v112, %v111
    %v121 = vld [vmem:[#allocation2] sm:$0xf]
    %v122 = vld [vmem:[#allocation2 + $0x4] sm:$0xf]
    %v123 = vld [vmem:[#allocation2 + $0x8] sm:$0xf]
    %v124 = vld [vmem:[#allocation2 + $0xc] sm:$0xf]
    %v129 = vunpack.c.l.b16 %v121
    %v130 = vunpack.c.l.b16 %v122
    %v131 = vunpack.c.l.b16 %v123
    %v132 = vunpack.c.l.b16 %v124
    %v133 = vpack.c.b16 %v130, %v129
    %v134 = vpack.c.b16 %v132, %v131
    %vm137 = vcmask 261120
    %v139 = vsel %vm137, %v113, 0
    %v142 = vsel %vm137, %v114, 0
    %v145 = vsel %vm137, %v115, 0
    %v148 = vsel %vm137, %v116, 0
    %v151 = vsel %vm137, %v117, 0
    %v154 = vsel %vm137, %v118, 0
    %v157 = vsel %vm137, %v119, 0
    %v160 = vsel %vm137, %v120, 0
    %162 = vmatprep.subr.bf16.mxu0 0
    %163 = vmatpush1.bf16.msra.mxu0 %v133
    %164 = vmatprep.subr.bf16.mxu0 0
    %165 = vmatpush1.bf16.msra.mxu0 %v134
    %166 = vmatprep.subr.bf16.mxu0 0
    %167 = vmatpush1.bf16.msra.mxu0 0
    %168 = vmatprep.subr.bf16.mxu0 0
    %169 = vmatpush1.bf16.msra.mxu0 0
    %170 = vmatprep.subr.bf16.mxu0 0
    %171 = vmatpush1.bf16.msra.mxu0 0
    %172 = vmatprep.subr.bf16.mxu0 0
    %173 = vmatpush1.bf16.msra.mxu0 0
    %174 = vmatprep.subr.bf16.mxu0 0
    %175 = vmatpush1.bf16.msra.mxu0 0
    %176 = vmatprep.subr.bf16.mxu0 0
    %177 = vmatpush1.bf16.msra.mxu0 0
    %178 = vmatprep.subr.bf16.mxu0 0
    %179 = vmatpush1.bf16.msra.mxu0 0
    %180 = vmatprep.subr.bf16.mxu0 0
    %181 = vmatpush1.bf16.msra.mxu0 0
    %182 = vmatprep.subr.bf16.mxu0 0
    %183 = vmatpush1.bf16.msra.mxu0 0
    %184 = vmatprep.subr.bf16.mxu0 0
    %185 = vmatpush1.bf16.msra.mxu0 0
    %186 = vmatprep.subr.bf16.mxu0 0
    %187 = vmatpush1.bf16.msra.mxu0 0
    %188 = vmatprep.subr.bf16.mxu0 0
    %189 = vmatpush1.bf16.msra.mxu0 0
    %190 = vmatprep.subr.bf16.mxu0 0
    %191 = vmatpush1.bf16.msra.mxu0 0
    %192 = vmatprep.subr.bf16.mxu0 0
    %193 = vmatpush1.bf16.msra.mxu0 0
    %194 = vmatprep.mubr.bf16.mxu0 0
    %195 = vmatmul.mubr.bf16.gmra.mrb[0].mxu0 %v139
    %v196 = vpop.f32.mrb[0].mxu0
    %v197 = vadd.f32 0.0, %v196
    %v198 = vpop.f32.mrb[0].mxu0
    %v199 = vpop.f32.mrb[0].mxu0
    %v200 = vadd.f32 0.0, %v199
    %v201 = vpop.f32.mrb[0].mxu0
    %202 = vmatprep.mubr.bf16.mxu0 0
    %203 = vmatmul.mubr.bf16.gmra.mrb[0].mxu0 %v142
    %v204 = vpop.f32.mrb[0].mxu0
    %v205 = vadd.f32 0.0, %v204
    %v206 = vpop.f32.mrb[0].mxu0
    %v207 = vpop.f32.mrb[0].mxu0
    %v208 = vadd.f32 0.0, %v207
    %v209 = vpop.f32.mrb[0].mxu0
    %210 = vmatprep.mubr.bf16.mxu0 0
    %211 = vmatmul.mubr.bf16.gmra.mrb[0].mxu0 %v145
    %v212 = vpop.f32.mrb[0].mxu0
    %v213 = vadd.f32 0.0, %v212
    %v214 = vpop.f32.mrb[0].mxu0
    %v215 = vpop.f32.mrb[0].mxu0
    %v216 = vadd.f32 0.0, %v215
    %v217 = vpop.f32.mrb[0].mxu0
    %218 = vmatprep.mubr.bf16.mxu0 0
    %219 = vmatmul.mubr.bf16.gmra.mrb[0].mxu0 %v148
    %v220 = vpop.f32.mrb[0].mxu0
    %v221 = vadd.f32 0.0, %v220
    %v222 = vpop.f32.mrb[0].mxu0
    %v223 = vpop.f32.mrb[0].mxu0
    %v224 = vadd.f32 0.0, %v223
    %v225 = vpop.f32.mrb[0].mxu0
    %226 = vmatprep.mubr.bf16.mxu0 0
    %227 = vmatmul.mubr.bf16.gmra.mrb[0].mxu0 %v151
    %v228 = vpop.f32.mrb[0].mxu0
    %v229 = vadd.f32 0.0, %v228
    %v230 = vpop.f32.mrb[0].mxu0
    %v231 = vpop.f32.mrb[0].mxu0
    %v232 = vadd.f32 0.0, %v231
    %v233 = vpop.f32.mrb[0].mxu0
    %234 = vmatprep.mubr.bf16.mxu0 0
    %235 = vmatmul.mubr.bf16.gmra.mrb[0].mxu0 %v154
    %v236 = vpop.f32.mrb[0].mxu0
    %v237 = vadd.f32 0.0, %v236
    %v238 = vpop.f32.mrb[0].mxu0
    %v239 = vpop.f32.mrb[0].mxu0
    %v240 = vadd.f32 0.0, %v239
    %v241 = vpop.f32.mrb[0].mxu0
    %242 = vmatprep.mubr.bf16.mxu0 0
    %243 = vmatmul.mubr.bf16.gmra.mrb[0].mxu0 %v157
    %v244 = vpop.f32.mrb[0].mxu0
    %v245 = vadd.f32 0.0, %v244
    %v246 = vpop.f32.mrb[0].mxu0
    %v247 = vpop.f32.mrb[0].mxu0
    %v248 = vadd.f32 0.0, %v247
    %v249 = vpop.f32.mrb[0].mxu0
    %250 = vmatprep.mubr.bf16.mxu0 0
    %251 = vmatmul.mubr.bf16.gmra.mrb[0].mxu0 %v160
    %v252 = vpop.f32.mrb[0].mxu0
    %v253 = vadd.f32 0.0, %v252
    %v254 = vpop.f32.mrb[0].mxu0
    %v255 = vpop.f32.mrb[0].mxu0
    %v256 = vadd.f32 0.0, %v255
    %v257 = vpop.f32.mrb[0].mxu0
    %258 = vdwg.mxu0
    %v275 = vunpack.c.l.b16 %v65
    %v276 = vunpack.c.l.b16 %v66
    %v277 = vunpack.c.l.b16 %v67
    %v278 = vunpack.c.l.b16 %v68
    %v279 = vunpack.c.l.b16 %v69
    %v280 = vunpack.c.l.b16 %v70
    %v281 = vunpack.c.l.b16 %v71
    %v282 = vunpack.c.l.b16 %v72
    %v283 = vunpack.c.l.b16 %v73
    %v284 = vunpack.c.l.b16 %v74
    %v285 = vunpack.c.l.b16 %v75
    %v286 = vunpack.c.l.b16 %v76
    %v287 = vunpack.c.l.b16 %v77
    %v288 = vunpack.c.l.b16 %v78
    %v289 = vunpack.c.l.b16 %v79
    %v290 = vunpack.c.l.b16 %v80
    %v291 = vpack.c.b16 %v276, %v275
    %v292 = vpack.c.b16 %v278, %v277
    %v293 = vpack.c.b16 %v280, %v279
    %v294 = vpack.c.b16 %v282, %v281
    %v295 = vpack.c.b16 %v284, %v283
    %v296 = vpack.c.b16 %v286, %v285
    %v297 = vpack.c.b16 %v288, %v287
    %v298 = vpack.c.b16 %v290, %v289
    %v323 = vunpack.c.l.b16 %v81
    %v324 = vunpack.c.l.b16 %v82
    %v325 = vunpack.c.l.b16 %v83
    %v326 = vunpack.c.l.b16 %v84
    %v327 = vunpack.c.l.b16 %v85
    %v328 = vunpack.c.l.b16 %v86
    %v329 = vunpack.c.l.b16 %v87
    %v330 = vunpack.c.l.b16 %v88
    %v331 = vunpack.c.l.b16 %v89
    %v332 = vunpack.c.l.b16 %v90
    %v333 = vunpack.c.l.b16 %v91
    %v334 = vunpack.c.l.b16 %v92
    %v335 = vunpack.c.l.b16 %v93
    %v336 = vunpack.c.l.b16 %v94
    %v337 = vunpack.c.l.b16 %v95
    %v338 = vunpack.c.l.b16 %v96
    %v339 = vpack.c.b16 %v324, %v323
    %v340 = vpack.c.b16 %v326, %v325
    %v341 = vpack.c.b16 %v328, %v327
    %v342 = vpack.c.b16 %v330, %v329
    %v343 = vpack.c.b16 %v332, %v331
    %v344 = vpack.c.b16 %v334, %v333
    %v345 = vpack.c.b16 %v336, %v335
    %v346 = vpack.c.b16 %v338, %v337
    %355 = vmatprep.subr.bf16.mxu0 0
    %356 = vmatpush1.bf16.msra.mxu0 %v339
    %357 = vmatprep.subr.bf16.mxu0 0
    %358 = vmatpush1.bf16.msra.mxu0 %v340
    %359 = vmatprep.subr.bf16.mxu0 0
    %360 = vmatpush1.bf16.msra.mxu0 %v341
    %361 = vmatprep.subr.bf16.mxu0 0
    %362 = vmatpush1.bf16.msra.mxu0 %v342
    %363 = vmatprep.subr.bf16.mxu0 0
    %364 = vmatpush1.bf16.msra.mxu0 %v343
    %365 = vmatprep.subr.bf16.mxu0 0
    %366 = vmatpush1.bf16.msra.mxu0 %v344
    %367 = vmatprep.subr.bf16.mxu0 0
    %368 = vmatpush1.bf16.msra.mxu0 %v345
    %369 = vmatprep.subr.bf16.mxu0 0
    %370 = vmatpush1.bf16.msra.mxu0 %v346
    %371 = vmatprep.subr.bf16.mxu0 0
    %372 = vmatpush1.bf16.msra.mxu0 0
    %373 = vmatprep.subr.bf16.mxu0 0
    %374 = vmatpush1.bf16.msra.mxu0 0
    %375 = vmatprep.subr.bf16.mxu0 0
    %376 = vmatpush1.bf16.msra.mxu0 0
    %377 = vmatprep.subr.bf16.mxu0 0
    %378 = vmatpush1.bf16.msra.mxu0 0
    %379 = vmatprep.subr.bf16.mxu0 0
    %380 = vmatpush1.bf16.msra.mxu0 0
    %381 = vmatprep.subr.bf16.mxu0 0
    %382 = vmatpush1.bf16.msra.mxu0 0
    %383 = vmatprep.subr.bf16.mxu0 0
    %384 = vmatpush1.bf16.msra.mxu0 0
    %385 = vmatprep.subr.bf16.mxu0 0
    %386 = vmatpush1.bf16.msra.mxu0 0
    %387 = vmatprep.mubr.bf16.mxu0 0
    %388 = vmatmul.mubr.bf16.gmra.mrb[0].mxu0 %v291
    %v389 = vpop.f32.mrb[0].mxu0
    %v390 = vadd.f32 %v197, %v389
    %v391 = vpop.f32.mrb[0].mxu0
    %v392 = vpop.f32.mrb[0].mxu0
    %v393 = vadd.f32 %v200, %v392
    %v394 = vpop.f32.mrb[0].mxu0
    %395 = vmatprep.mubr.bf16.mxu0 0
    %396 = vmatmul.mubr.bf16.gmra.mrb[0].mxu0 %v292
    %v397 = vpop.f32.mrb[0].mxu0
    %v398 = vadd.f32 %v205, %v397
    %v399 = vpop.f32.mrb[0].mxu0
    %v400 = vpop.f32.mrb[0].mxu0
    %v401 = vadd.f32 %v208, %v400
    %v402 = vpop.f32.mrb[0].mxu0
    %403 = vmatprep.mubr.bf16.mxu0 0
    %404 = vmatmul.mubr.bf16.gmra.mrb[0].mxu0 %v293
    %v405 = vpop.f32.mrb[0].mxu0
    %v406 = vadd.f32 %v213, %v405
    %v407 = vpop.f32.mrb[0].mxu0
    %v408 = vpop.f32.mrb[0].mxu0
    %v409 = vadd.f32 %v216, %v408
    %v410 = vpop.f32.mrb[0].mxu0
    %411 = vmatprep.mubr.bf16.mxu0 0
    %412 = vmatmul.mubr.bf16.gmra.mrb[0].mxu0 %v294
    %v413 = vpop.f32.mrb[0].mxu0
    %v414 = vadd.f32 %v221, %v413
    %v415 = vpop.f32.mrb[0].mxu0
    %v416 = vpop.f32.mrb[0].mxu0
    %v417 = vadd.f32 %v224, %v416
    %v418 = vpop.f32.mrb[0].mxu0
    %419 = vmatprep.mubr.bf16.mxu0 0
    %420 = vmatmul.mubr.bf16.gmra.mrb[0].mxu0 %v295
    %v421 = vpop.f32.mrb[0].mxu0
    %v422 = vadd.f32 %v229, %v421
    %v423 = vpop.f32.mrb[0].mxu0
    %v424 = vpop.f32.mrb[0].mxu0
    %v425 = vadd.f32 %v232, %v424
    %v426 = vpop.f32.mrb[0].mxu0
    %427 = vmatprep.mubr.bf16.mxu0 0
    %428 = vmatmul.mubr.bf16.gmra.mrb[0].mxu0 %v296
    %v429 = vpop.f32.mrb[0].mxu0
    %v430 = vadd.f32 %v237, %v429
    %v431 = vpop.f32.mrb[0].mxu0
    %v432 = vpop.f32.mrb[0].mxu0
    %v433 = vadd.f32 %v240, %v432
    %v434 = vpop.f32.mrb[0].mxu0
    %435 = vmatprep.mubr.bf16.mxu0 0
    %436 = vmatmul.mubr.bf16.gmra.mrb[0].mxu0 %v297
    %v437 = vpop.f32.mrb[0].mxu0
    %v438 = vadd.f32 %v245, %v437
    %v439 = vpop.f32.mrb[0].mxu0
    %v440 = vpop.f32.mrb[0].mxu0
    %v441 = vadd.f32 %v248, %v440
    %v442 = vpop.f32.mrb[0].mxu0
    %443 = vmatprep.mubr.bf16.mxu0 0
    %444 = vmatmul.mubr.bf16.gmra.mrb[0].mxu0 %v298
    %v445 = vpop.f32.mrb[0].mxu0
    %v446 = vadd.f32 %v253, %v445
    %v447 = vpop.f32.mrb[0].mxu0
    %v448 = vpop.f32.mrb[0].mxu0
    %v449 = vadd.f32 %v256, %v448
    %v450 = vpop.f32.mrb[0].mxu0
    %451 = vdwg.mxu0
    %v452 = vld [vmem:[%s3] sm:$0x1]
    %v454 = vlaneseq
    %v455 = vshrl.u32 %v454, 7
    %v456 = vsub.s32 0, %v455
    %v457 = vrot.slane %v452, %v456
    %v459 = vadd.f32 %v390, %v457
    %v460 = vadd.f32 %v393, %v457
    %v461 = vadd.f32 %v398, %v457
    %v462 = vadd.f32 %v401, %v457
    %v463 = vadd.f32 %v406, %v457
    %v464 = vadd.f32 %v409, %v457
    %v465 = vadd.f32 %v414, %v457
    %v466 = vadd.f32 %v417, %v457
    %v467 = vadd.f32 %v422, %v457
    %v468 = vadd.f32 %v425, %v457
    %v469 = vadd.f32 %v430, %v457
    %v470 = vadd.f32 %v433, %v457
    %v471 = vadd.f32 %v438, %v457
    %v472 = vadd.f32 %v441, %v457
    %v473 = vadd.f32 %v446, %v457
    %v474 = vadd.f32 %v449, %v457
    %v475 = vxor.u32 %v459, 2147483648
    %v476 = vxor.u32 %v460, 2147483648
    %v477 = vxor.u32 %v461, 2147483648
    %v478 = vxor.u32 %v462, 2147483648
    %v479 = vxor.u32 %v463, 2147483648
    %v480 = vxor.u32 %v464, 2147483648
    %v481 = vxor.u32 %v465, 2147483648
    %v482 = vxor.u32 %v466, 2147483648
    %v483 = vxor.u32 %v467, 2147483648
    %v484 = vxor.u32 %v468, 2147483648
    %v485 = vxor.u32 %v469, 2147483648
    %v486 = vxor.u32 %v470, 2147483648
    %v487 = vxor.u32 %v471, 2147483648
    %v488 = vxor.u32 %v472, 2147483648
    %v489 = vxor.u32 %v473, 2147483648
    %v490 = vxor.u32 %v474, 2147483648
    %v491 = vmul.f32 %v475, 1.442695
    %v492 = vpow.pop %v491
    %v493 = vmul.f32 %v476, 1.442695
    %v494 = vpow.pop %v493
    %v495 = vmul.f32 %v477, 1.442695
    %v496 = vpow.pop %v495
    %v497 = vmul.f32 %v478, 1.442695
    %v498 = vpow.pop %v497
    %v499 = vmul.f32 %v479, 1.442695
    %v500 = vpow.pop %v499
    %v501 = vmul.f32 %v480, 1.442695
    %v502 = vpow.pop %v501
    %v503 = vmul.f32 %v481, 1.442695
    %v504 = vpow.pop %v503
    %v505 = vmul.f32 %v482, 1.442695
    %v506 = vpow.pop %v505
    %v507 = vmul.f32 %v483, 1.442695
    %v508 = vpow.pop %v507
    %v509 = vmul.f32 %v484, 1.442695
    %v510 = vpow.pop %v509
    %v511 = vmul.f32 %v485, 1.442695
    %v512 = vpow.pop %v511
    %v513 = vmul.f32 %v486, 1.442695
    %v514 = vpow.pop %v513
    %v515 = vmul.f32 %v487, 1.442695
    %v516 = vpow.pop %v515
    %v517 = vmul.f32 %v488, 1.442695
    %v518 = vpow.pop %v517
    %v519 = vmul.f32 %v489, 1.442695
    %v520 = vpow.pop %v519
    %v521 = vmul.f32 %v490, 1.442695
    %v522 = vpow.pop %v521
    %v523 = vadd.f32 %v492, 1.0
    %v524 = vadd.f32 %v494, 1.0
    %v525 = vadd.f32 %v496, 1.0
    %v526 = vadd.f32 %v498, 1.0
    %v527 = vadd.f32 %v500, 1.0
    %v528 = vadd.f32 %v502, 1.0
    %v529 = vadd.f32 %v504, 1.0
    %v530 = vadd.f32 %v506, 1.0
    %v531 = vadd.f32 %v508, 1.0
    %v532 = vadd.f32 %v510, 1.0
    %v533 = vadd.f32 %v512, 1.0
    %v534 = vadd.f32 %v514, 1.0
    %v535 = vadd.f32 %v516, 1.0
    %v536 = vadd.f32 %v518, 1.0
    %v537 = vadd.f32 %v520, 1.0
    %v538 = vadd.f32 %v522, 1.0
    %v539 = vrcp.pop %v523
    %v540 = vmul.f32 1.0, %v539
    %v541 = vrcp.pop %v524
    %v542 = vmul.f32 1.0, %v541
    %v543 = vrcp.pop %v525
    %v544 = vmul.f32 1.0, %v543
    %v545 = vrcp.pop %v526
    %v546 = vmul.f32 1.0, %v545
    %v547 = vrcp.pop %v527
    %v548 = vmul.f32 1.0, %v547
    %v549 = vrcp.pop %v528
    %v550 = vmul.f32 1.0, %v549
    %v551 = vrcp.pop %v529
    %v552 = vmul.f32 1.0, %v551
    %v553 = vrcp.pop %v530
    %v554 = vmul.f32 1.0, %v553
    %v555 = vrcp.pop %v531
    %v556 = vmul.f32 1.0, %v555
    %v557 = vrcp.pop %v532
    %v558 = vmul.f32 1.0, %v557
    %v559 = vrcp.pop %v533
    %v560 = vmul.f32 1.0, %v559
    %v561 = vrcp.pop %v534
    %v562 = vmul.f32 1.0, %v561
    %v563 = vrcp.pop %v535
    %v564 = vmul.f32 1.0, %v563
    %v565 = vrcp.pop %v536
    %v566 = vmul.f32 1.0, %v565
    %v567 = vrcp.pop %v537
    %v568 = vmul.f32 1.0, %v567
    %v569 = vrcp.pop %v538
    %v570 = vmul.f32 1.0, %v569
    %v571 = vpack.c.bf16 %v542, %v540
    %v572 = vpack.c.bf16 %v546, %v544
    %v573 = vpack.c.bf16 %v550, %v548
    %v574 = vpack.c.bf16 %v554, %v552
    %v575 = vpack.c.bf16 %v558, %v556
    %v576 = vpack.c.bf16 %v562, %v560
    %v577 = vpack.c.bf16 %v566, %v564
    %v578 = vpack.c.bf16 %v570, %v568
    %v579 = vld [vmem:[%s5] sm:$0xf]
    %v580 = vld [vmem:[%s5 + $0x4] sm:$0xf]
    %v581 = vld [vmem:[%s5 + $0x8] sm:$0xf]
    %v582 = vld [vmem:[%s5 + $0xc] sm:$0xf]
    %v583 = vld [vmem:[%s5 + $0x10] sm:$0xf]
    %v584 = vld [vmem:[%s5 + $0x14] sm:$0xf]
    %v585 = vld [vmem:[%s5 + $0x18] sm:$0xf]
    %v586 = vld [vmem:[%s5 + $0x1c] sm:$0xf]
    %v587 = vld [vmem:[%s5 + $0x20] sm:$0xf]
    %v588 = vld [vmem:[%s5 + $0x24] sm:$0xf]
    %v589 = vld [vmem:[%s5 + $0x28] sm:$0xf]
    %v590 = vld [vmem:[%s5 + $0x2c] sm:$0xf]
    %v591 = vld [vmem:[%s5 + $0x30] sm:$0xf]
    %v592 = vld [vmem:[%s5 + $0x34] sm:$0xf]
    %v593 = vld [vmem:[%s5 + $0x38] sm:$0xf]
    %v594 = vld [vmem:[%s5 + $0x3c] sm:$0xf]
    %v595 = vld [vmem:[%s6] sm:$0x1]
    %v597 = vlaneseq
    %v598 = vshrl.u32 %v597, 7
    %v599 = vsub.s32 0, %v598
    %v600 = vrot.slane %v595, %v599
    %v618 = vunpack.c.l.b16 %v579
    %v619 = vunpack.c.l.b16 %v580
    %v620 = vunpack.c.l.b16 %v581
    %v621 = vunpack.c.l.b16 %v582
    %v622 = vunpack.c.l.b16 %v583
    %v623 = vunpack.c.l.b16 %v584
    %v624 = vunpack.c.l.b16 %v585
    %v625 = vunpack.c.l.b16 %v586
    %v626 = vunpack.c.l.b16 %v587
    %v627 = vunpack.c.l.b16 %v588
    %v628 = vunpack.c.l.b16 %v589
    %v629 = vunpack.c.l.b16 %v590
    %v630 = vunpack.c.l.b16 %v591
    %v631 = vunpack.c.l.b16 %v592
    %v632 = vunpack.c.l.b16 %v593
    %v633 = vunpack.c.l.b16 %v594
    %v634 = vpack.c.b16 %v619, %v618
    %v635 = vpack.c.b16 %v621, %v620
    %v636 = vpack.c.b16 %v623, %v622
    %v637 = vpack.c.b16 %v625, %v624
    %v638 = vpack.c.b16 %v627, %v626
    %v639 = vpack.c.b16 %v629, %v628
    %v640 = vpack.c.b16 %v631, %v630
    %v641 = vpack.c.b16 %v633, %v632
    %650 = vmatprep.subr.bf16.mxu0 0
    %651 = vmatpush1.bf16.msra.mxu0 %v634
    %652 = vmatprep.subr.bf16.mxu0 0
    %653 = vmatpush1.bf16.msra.mxu0 %v635
    %654 = vmatprep.subr.bf16.mxu0 0
    %655 = vmatpush1.bf16.msra.mxu0 %v636
    %656 = vmatprep.subr.bf16.mxu0 0
    %657 = vmatpush1.bf16.msra.mxu0 %v637
    %658 = vmatprep.subr.bf16.mxu0 0
    %659 = vmatpush1.bf16.msra.mxu0 %v638
    %660 = vmatprep.subr.bf16.mxu0 0
    %661 = vmatpush1.bf16.msra.mxu0 %v639
    %662 = vmatprep.subr.bf16.mxu0 0
    %663 = vmatpush1.bf16.msra.mxu0 %v640
    %664 = vmatprep.subr.bf16.mxu0 0
    %665 = vmatpush1.bf16.msra.mxu0 %v641
    %666 = vmatprep.subr.bf16.mxu0 0
    %667 = vmatpush1.bf16.msra.mxu0 0
    %668 = vmatprep.subr.bf16.mxu0 0
    %669 = vmatpush1.bf16.msra.mxu0 0
    %670 = vmatprep.subr.bf16.mxu0 0
    %671 = vmatpush1.bf16.msra.mxu0 0
    %672 = vmatprep.subr.bf16.mxu0 0
    %673 = vmatpush1.bf16.msra.mxu0 0
    %674 = vmatprep.subr.bf16.mxu0 0
    %675 = vmatpush1.bf16.msra.mxu0 0
    %676 = vmatprep.subr.bf16.mxu0 0
    %677 = vmatpush1.bf16.msra.mxu0 0
    %678 = vmatprep.subr.bf16.mxu0 0
    %679 = vmatpush1.bf16.msra.mxu0 0
    %680 = vmatprep.subr.bf16.mxu0 0
    %681 = vmatpush1.bf16.msra.mxu0 0
    %682 = vmatprep.mubr.bf16.mxu0 0
    %683 = vmatmul.mubr.bf16.gmra.mrb[0].mxu0 %v571
    %v684 = vpop.f32.mrb[0].mxu0
    %v685 = vadd.f32 %v600, %v684
    %v686 = vpop.f32.mrb[0].mxu0
    %v687 = vpop.f32.mrb[0].mxu0
    %v688 = vadd.f32 %v600, %v687
    %v689 = vpop.f32.mrb[0].mxu0
    %690 = vmatprep.mubr.bf16.mxu0 0
    %691 = vmatmul.mubr.bf16.gmra.mrb[0].mxu0 %v572
    %v692 = vpop.f32.mrb[0].mxu0
    %v693 = vadd.f32 %v600, %v692
    %v694 = vpop.f32.mrb[0].mxu0
    %v695 = vpop.f32.mrb[0].mxu0
    %v696 = vadd.f32 %v600, %v695
    %v697 = vpop.f32.mrb[0].mxu0
    %698 = vmatprep.mubr.bf16.mxu0 0
    %699 = vmatmul.mubr.bf16.gmra.mrb[0].mxu0 %v573
    %v700 = vpop.f32.mrb[0].mxu0
    %v701 = vadd.f32 %v600, %v700
    %v702 = vpop.f32.mrb[0].mxu0
    %v703 = vpop.f32.mrb[0].mxu0
    %v704 = vadd.f32 %v600, %v703
    %v705 = vpop.f32.mrb[0].mxu0
    %706 = vmatprep.mubr.bf16.mxu0 0
    %707 = vmatmul.mubr.bf16.gmra.mrb[0].mxu0 %v574
    %v708 = vpop.f32.mrb[0].mxu0
    %v709 = vadd.f32 %v600, %v708
    %v710 = vpop.f32.mrb[0].mxu0
    %v711 = vpop.f32.mrb[0].mxu0
    %v712 = vadd.f32 %v600, %v711
    %v713 = vpop.f32.mrb[0].mxu0
    %714 = vmatprep.mubr.bf16.mxu0 0
    %715 = vmatmul.mubr.bf16.gmra.mrb[0].mxu0 %v575
    %v716 = vpop.f32.mrb[0].mxu0
    %v717 = vadd.f32 %v600, %v716
    %v718 = vpop.f32.mrb[0].mxu0
    %v719 = vpop.f32.mrb[0].mxu0
    %v720 = vadd.f32 %v600, %v719
    %v721 = vpop.f32.mrb[0].mxu0
    %722 = vmatprep.mubr.bf16.mxu0 0
    %723 = vmatmul.mubr.bf16.gmra.mrb[0].mxu0 %v576
    %v724 = vpop.f32.mrb[0].mxu0
    %v725 = vadd.f32 %v600, %v724
    %v726 = vpop.f32.mrb[0].mxu0
    %v727 = vpop.f32.mrb[0].mxu0
    %v728 = vadd.f32 %v600, %v727
    %v729 = vpop.f32.mrb[0].mxu0
    %730 = vmatprep.mubr.bf16.mxu0 0
    %731 = vmatmul.mubr.bf16.gmra.mrb[0].mxu0 %v577
    %v732 = vpop.f32.mrb[0].mxu0
    %v733 = vadd.f32 %v600, %v732
    %v734 = vpop.f32.mrb[0].mxu0
    %v735 = vpop.f32.mrb[0].mxu0
    %v736 = vadd.f32 %v600, %v735
    %v737 = vpop.f32.mrb[0].mxu0
    %738 = vmatprep.mubr.bf16.mxu0 0
    %739 = vmatmul.mubr.bf16.gmra.mrb[0].mxu0 %v578
    %v740 = vpop.f32.mrb[0].mxu0
    %v741 = vadd.f32 %v600, %v740
    %v742 = vpop.f32.mrb[0].mxu0
    %v743 = vpop.f32.mrb[0].mxu0
    %v744 = vadd.f32 %v600, %v743
    %v745 = vpop.f32.mrb[0].mxu0
    %746 = vdwg.mxu0
    %v747 = vxor.u32 %v685, 2147483648
    %v748 = vxor.u32 %v688, 2147483648
    %v749 = vxor.u32 %v693, 2147483648
    %v750 = vxor.u32 %v696, 2147483648
    %v751 = vxor.u32 %v701, 2147483648
    %v752 = vxor.u32 %v704, 2147483648
    %v753 = vxor.u32 %v709, 2147483648
    %v754 = vxor.u32 %v712, 2147483648
    %v755 = vxor.u32 %v717, 2147483648
    %v756 = vxor.u32 %v720, 2147483648
    %v757 = vxor.u32 %v725, 2147483648
    %v758 = vxor.u32 %v728, 2147483648
    %v759 = vxor.u32 %v733, 2147483648
    %v760 = vxor.u32 %v736, 2147483648
    %v761 = vxor.u32 %v741, 2147483648
    %v762 = vxor.u32 %v744, 2147483648
    %v763 = vmul.f32 %v747, 1.442695
    %v764 = vpow.pop %v763
    %v765 = vmul.f32 %v748, 1.442695
    %v766 = vpow.pop %v765
    %v767 = vmul.f32 %v749, 1.442695
    %v768 = vpow.pop %v767
    %v769 = vmul.f32 %v750, 1.442695
    %v770 = vpow.pop %v769
    %v771 = vmul.f32 %v751, 1.442695
    %v772 = vpow.pop %v771
    %v773 = vmul.f32 %v752, 1.442695
    %v774 = vpow.pop %v773
    %v775 = vmul.f32 %v753, 1.442695
    %v776 = vpow.pop %v775
    %v777 = vmul.f32 %v754, 1.442695
    %v778 = vpow.pop %v777
    %v779 = vmul.f32 %v755, 1.442695
    %v780 = vpow.pop %v779
    %v781 = vmul.f32 %v756, 1.442695
    %v782 = vpow.pop %v781
    %v783 = vmul.f32 %v757, 1.442695
    %v784 = vpow.pop %v783
    %v785 = vmul.f32 %v758, 1.442695
    %v786 = vpow.pop %v785
    %v787 = vmul.f32 %v759, 1.442695
    %v788 = vpow.pop %v787
    %v789 = vmul.f32 %v760, 1.442695
    %v790 = vpow.pop %v789
    %v791 = vmul.f32 %v761, 1.442695
    %v792 = vpow.pop %v791
    %v793 = vmul.f32 %v762, 1.442695
    %v794 = vpow.pop %v793
    %v795 = vadd.f32 %v764, 1.0
    %v796 = vadd.f32 %v766, 1.0
    %v797 = vadd.f32 %v768, 1.0
    %v798 = vadd.f32 %v770, 1.0
    %v799 = vadd.f32 %v772, 1.0
    %v800 = vadd.f32 %v774, 1.0
    %v801 = vadd.f32 %v776, 1.0
    %v802 = vadd.f32 %v778, 1.0
    %v803 = vadd.f32 %v780, 1.0
    %v804 = vadd.f32 %v782, 1.0
    %v805 = vadd.f32 %v784, 1.0
    %v806 = vadd.f32 %v786, 1.0
    %v807 = vadd.f32 %v788, 1.0
    %v808 = vadd.f32 %v790, 1.0
    %v809 = vadd.f32 %v792, 1.0
    %v810 = vadd.f32 %v794, 1.0
    %v811 = vrcp.pop %v795
    %v812 = vmul.f32 1.0, %v811
    %v813 = vrcp.pop %v796
    %v814 = vmul.f32 1.0, %v813
    %v815 = vrcp.pop %v797
    %v816 = vmul.f32 1.0, %v815
    %v817 = vrcp.pop %v798
    %v818 = vmul.f32 1.0, %v817
    %v819 = vrcp.pop %v799
    %v820 = vmul.f32 1.0, %v819
    %v821 = vrcp.pop %v800
    %v822 = vmul.f32 1.0, %v821
    %v823 = vrcp.pop %v801
    %v824 = vmul.f32 1.0, %v823
    %v825 = vrcp.pop %v802
    %v826 = vmul.f32 1.0, %v825
    %v827 = vrcp.pop %v803
    %v828 = vmul.f32 1.0, %v827
    %v829 = vrcp.pop %v804
    %v830 = vmul.f32 1.0, %v829
    %v831 = vrcp.pop %v805
    %v832 = vmul.f32 1.0, %v831
    %v833 = vrcp.pop %v806
    %v834 = vmul.f32 1.0, %v833
    %v835 = vrcp.pop %v807
    %v836 = vmul.f32 1.0, %v835
    %v837 = vrcp.pop %v808
    %v838 = vmul.f32 1.0, %v837
    %v839 = vrcp.pop %v809
    %v840 = vmul.f32 1.0, %v839
    %v841 = vrcp.pop %v810
    %v842 = vmul.f32 1.0, %v841
    %v843 = vadd.f32 %v812, %v540
    %v844 = vadd.f32 %v814, %v542
    %v845 = vadd.f32 %v816, %v544
    %v846 = vadd.f32 %v818, %v546
    %v847 = vadd.f32 %v820, %v548
    %v848 = vadd.f32 %v822, %v550
    %v849 = vadd.f32 %v824, %v552
    %v850 = vadd.f32 %v826, %v554
    %v851 = vadd.f32 %v828, %v556
    %v852 = vadd.f32 %v830, %v558
    %v853 = vadd.f32 %v832, %v560
    %v854 = vadd.f32 %v834, %v562
    %v855 = vadd.f32 %v836, %v564
    %v856 = vadd.f32 %v838, %v566
    %v857 = vadd.f32 %v840, %v568
    %v858 = vadd.f32 %v842, %v570
    %v859 = vpack.c.bf16 %v844, %v843
    %v860 = vpack.c.bf16 %v846, %v845
    %v861 = vpack.c.bf16 %v848, %v847
    %v862 = vpack.c.bf16 %v850, %v849
    %v863 = vpack.c.bf16 %v852, %v851
    %v864 = vpack.c.bf16 %v854, %v853
    %v865 = vpack.c.bf16 %v856, %v855
    %v866 = vpack.c.bf16 %v858, %v857
    %v867 = vld [vmem:[%s7] sm:$0xf]
    %v868 = vld [vmem:[%s7 + $0x4] sm:$0xf]
    %v869 = vld [vmem:[%s7 + $0x8] sm:$0xf]
    %v870 = vld [vmem:[%s7 + $0xc] sm:$0xf]
    %v871 = vld [vmem:[%s7 + $0x10] sm:$0xf]
    %v872 = vld [vmem:[%s7 + $0x14] sm:$0xf]
    %v873 = vld [vmem:[%s7 + $0x18] sm:$0xf]
    %v874 = vld [vmem:[%s7 + $0x1c] sm:$0xf]
    %v875 = vld [vmem:[%s7 + $0x20] sm:$0xf]
    %v876 = vld [vmem:[%s7 + $0x24] sm:$0xf]
    %v877 = vld [vmem:[%s7 + $0x28] sm:$0xf]
    %v878 = vld [vmem:[%s7 + $0x2c] sm:$0xf]
    %v879 = vld [vmem:[%s7 + $0x30] sm:$0xf]
    %v880 = vld [vmem:[%s7 + $0x34] sm:$0xf]
    %v881 = vld [vmem:[%s7 + $0x38] sm:$0xf]
    %v882 = vld [vmem:[%s7 + $0x3c] sm:$0xf]
    %v883 = vld [vmem:[#allocation4] sm:$0x1]
    %v885 = vlaneseq
    %v886 = vshrl.u32 %v885, 7
    %v887 = vsub.s32 0, %v886
    %v888 = vrot.slane %v883, %v887
    %v906 = vunpack.c.l.b16 %v867
    %v907 = vunpack.c.l.b16 %v868
    %v908 = vunpack.c.l.b16 %v869
    %v909 = vunpack.c.l.b16 %v870
    %v910 = vunpack.c.l.b16 %v871
    %v911 = vunpack.c.l.b16 %v872
    %v912 = vunpack.c.l.b16 %v873
    %v913 = vunpack.c.l.b16 %v874
    %v914 = vunpack.c.l.b16 %v875
    %v915 = vunpack.c.l.b16 %v876
    %v916 = vunpack.c.l.b16 %v877
    %v917 = vunpack.c.l.b16 %v878
    %v918 = vunpack.c.l.b16 %v879
    %v919 = vunpack.c.l.b16 %v880
    %v920 = vunpack.c.l.b16 %v881
    %v921 = vunpack.c.l.b16 %v882
    %v922 = vpack.c.b16 %v907, %v906
    %v923 = vpack.c.b16 %v909, %v908
    %v924 = vpack.c.b16 %v911, %v910
    %v925 = vpack.c.b16 %v913, %v912
    %v926 = vpack.c.b16 %v915, %v914
    %v927 = vpack.c.b16 %v917, %v916
    %v928 = vpack.c.b16 %v919, %v918
    %v929 = vpack.c.b16 %v921, %v920
    %938 = vmatprep.subr.bf16.mxu0 0
    %939 = vmatpush1.bf16.msra.mxu0 %v922
    %940 = vmatprep.subr.bf16.mxu0 0
    %941 = vmatpush1.bf16.msra.mxu0 %v923
    %942 = vmatprep.subr.bf16.mxu0 0
    %943 = vmatpush1.bf16.msra.mxu0 %v924
    %944 = vmatprep.subr.bf16.mxu0 0
    %945 = vmatpush1.bf16.msra.mxu0 %v925
    %946 = vmatprep.subr.bf16.mxu0 0
    %947 = vmatpush1.bf16.msra.mxu0 %v926
    %948 = vmatprep.subr.bf16.mxu0 0
    %949 = vmatpush1.bf16.msra.mxu0 %v927
    %950 = vmatprep.subr.bf16.mxu0 0
    %951 = vmatpush1.bf16.msra.mxu0 %v928
    %952 = vmatprep.subr.bf16.mxu0 0
    %953 = vmatpush1.bf16.msra.mxu0 %v929
    %954 = vmatprep.subr.bf16.mxu0 0
    %955 = vmatpush1.bf16.msra.mxu0 0
    %956 = vmatprep.subr.bf16.mxu0 0
    %957 = vmatpush1.bf16.msra.mxu0 0
    %958 = vmatprep.subr.bf16.mxu0 0
    %959 = vmatpush1.bf16.msra.mxu0 0
    %960 = vmatprep.subr.bf16.mxu0 0
    %961 = vmatpush1.bf16.msra.mxu0 0
    %962 = vmatprep.subr.bf16.mxu0 0
    %963 = vmatpush1.bf16.msra.mxu0 0
    %964 = vmatprep.subr.bf16.mxu0 0
    %965 = vmatpush1.bf16.msra.mxu0 0
    %966 = vmatprep.subr.bf16.mxu0 0
    %967 = vmatpush1.bf16.msra.mxu0 0
    %968 = vmatprep.subr.bf16.mxu0 0
    %969 = vmatpush1.bf16.msra.mxu0 0
    %970 = vmatprep.mubr.bf16.mxu0 0
    %971 = vmatmul.mubr.bf16.gmra.mrb[0].mxu0 %v859
    %v972 = vpop.f32.mrb[0].mxu0
    %v973 = vadd.f32 %v888, %v972
    %v974 = vpop.f32.mrb[0].mxu0
    %v975 = vpop.f32.mrb[0].mxu0
    %v976 = vadd.f32 %v888, %v975
    %v977 = vpop.f32.mrb[0].mxu0
    %978 = vmatprep.mubr.bf16.mxu0 0
    %979 = vmatmul.mubr.bf16.gmra.mrb[0].mxu0 %v860
    %v980 = vpop.f32.mrb[0].mxu0
    %v981 = vadd.f32 %v888, %v980
    %v982 = vpop.f32.mrb[0].mxu0
    %v983 = vpop.f32.mrb[0].mxu0
    %v984 = vadd.f32 %v888, %v983
    %v985 = vpop.f32.mrb[0].mxu0
    %986 = vmatprep.mubr.bf16.mxu0 0
    %987 = vmatmul.mubr.bf16.gmra.mrb[0].mxu0 %v861
    %v988 = vpop.f32.mrb[0].mxu0
    %v989 = vadd.f32 %v888, %v988
    %v990 = vpop.f32.mrb[0].mxu0
    %v991 = vpop.f32.mrb[0].mxu0
    %v992 = vadd.f32 %v888, %v991
    %v993 = vpop.f32.mrb[0].mxu0
    %994 = vmatprep.mubr.bf16.mxu0 0
    %995 = vmatmul.mubr.bf16.gmra.mrb[0].mxu0 %v862
    %v996 = vpop.f32.mrb[0].mxu0
    %v997 = vadd.f32 %v888, %v996
    %v998 = vpop.f32.mrb[0].mxu0
    %v999 = vpop.f32.mrb[0].mxu0
    %v1000 = vadd.f32 %v888, %v999
    %v1001 = vpop.f32.mrb[0].mxu0
    %1002 = vmatprep.mubr.bf16.mxu0 0
    %1003 = vmatmul.mubr.bf16.gmra.mrb[0].mxu0 %v863
    %v1004 = vpop.f32.mrb[0].mxu0
    %v1005 = vadd.f32 %v888, %v1004
    %v1006 = vpop.f32.mrb[0].mxu0
    %v1007 = vpop.f32.mrb[0].mxu0
    %v1008 = vadd.f32 %v888, %v1007
    %v1009 = vpop.f32.mrb[0].mxu0
    %1010 = vmatprep.mubr.bf16.mxu0 0
    %1011 = vmatmul.mubr.bf16.gmra.mrb[0].mxu0 %v864
    %v1012 = vpop.f32.mrb[0].mxu0
    %v1013 = vadd.f32 %v888, %v1012
    %v1014 = vpop.f32.mrb[0].mxu0
    %v1015 = vpop.f32.mrb[0].mxu0
    %v1016 = vadd.f32 %v888, %v1015
    %v1017 = vpop.f32.mrb[0].mxu0
    %1018 = vmatprep.mubr.bf16.mxu0 0
    %1019 = vmatmul.mubr.bf16.gmra.mrb[0].mxu0 %v865
    %v1020 = vpop.f32.mrb[0].mxu0
    %v1021 = vadd.f32 %v888, %v1020
    %v1022 = vpop.f32.mrb[0].mxu0
    %v1023 = vpop.f32.mrb[0].mxu0
    %v1024 = vadd.f32 %v888, %v1023
    %v1025 = vpop.f32.mrb[0].mxu0
    %1026 = vmatprep.mubr.bf16.mxu0 0
    %1027 = vmatmul.mubr.bf16.gmra.mrb[0].mxu0 %v866
    %v1028 = vpop.f32.mrb[0].mxu0
    %v1029 = vadd.f32 %v888, %v1028
    %v1030 = vpop.f32.mrb[0].mxu0
    %v1031 = vpop.f32.mrb[0].mxu0
    %v1032 = vadd.f32 %v888, %v1031
    %v1033 = vpop.f32.mrb[0].mxu0
    %1034 = vdwg.mxu0
    %v1035 = vxor.u32 %v973, 2147483648
    %v1036 = vxor.u32 %v976, 2147483648
    %v1037 = vxor.u32 %v981, 2147483648
    %v1038 = vxor.u32 %v984, 2147483648
    %v1039 = vxor.u32 %v989, 2147483648
    %v1040 = vxor.u32 %v992, 2147483648
    %v1041 = vxor.u32 %v997, 2147483648
    %v1042 = vxor.u32 %v1000, 2147483648
    %v1043 = vxor.u32 %v1005, 2147483648
    %v1044 = vxor.u32 %v1008, 2147483648
    %v1045 = vxor.u32 %v1013, 2147483648
    %v1046 = vxor.u32 %v1016, 2147483648
    %v1047 = vxor.u32 %v1021, 2147483648
    %v1048 = vxor.u32 %v1024, 2147483648
    %v1049 = vxor.u32 %v1029, 2147483648
    %v1050 = vxor.u32 %v1032, 2147483648
    %v1051 = vmul.f32 %v1035, 1.442695
    %v1052 = vpow.pop %v1051
    %v1053 = vmul.f32 %v1036, 1.442695
    %v1054 = vpow.pop %v1053
    %v1055 = vmul.f32 %v1037, 1.442695
    %v1056 = vpow.pop %v1055
    %v1057 = vmul.f32 %v1038, 1.442695
    %v1058 = vpow.pop %v1057
    %v1059 = vmul.f32 %v1039, 1.442695
    %v1060 = vpow.pop %v1059
    %v1061 = vmul.f32 %v1040, 1.442695
    %v1062 = vpow.pop %v1061
    %v1063 = vmul.f32 %v1041, 1.442695
    %v1064 = vpow.pop %v1063
    %v1065 = vmul.f32 %v1042, 1.442695
    %v1066 = vpow.pop %v1065
    %v1067 = vmul.f32 %v1043, 1.442695
    %v1068 = vpow.pop %v1067
    %v1069 = vmul.f32 %v1044, 1.442695
    %v1070 = vpow.pop %v1069
    %v1071 = vmul.f32 %v1045, 1.442695
    %v1072 = vpow.pop %v1071
    %v1073 = vmul.f32 %v1046, 1.442695
    %v1074 = vpow.pop %v1073
    %v1075 = vmul.f32 %v1047, 1.442695
    %v1076 = vpow.pop %v1075
    %v1077 = vmul.f32 %v1048, 1.442695
    %v1078 = vpow.pop %v1077
    %v1079 = vmul.f32 %v1049, 1.442695
    %v1080 = vpow.pop %v1079
    %v1081 = vmul.f32 %v1050, 1.442695
    %v1082 = vpow.pop %v1081
    %v1083 = vadd.f32 %v1052, 1.0
    %v1084 = vadd.f32 %v1054, 1.0
    %v1085 = vadd.f32 %v1056, 1.0
    %v1086 = vadd.f32 %v1058, 1.0
    %v1087 = vadd.f32 %v1060, 1.0
    %v1088 = vadd.f32 %v1062, 1.0
    %v1089 = vadd.f32 %v1064, 1.0
    %v1090 = vadd.f32 %v1066, 1.0
    %v1091 = vadd.f32 %v1068, 1.0
    %v1092 = vadd.f32 %v1070, 1.0
    %v1093 = vadd.f32 %v1072, 1.0
    %v1094 = vadd.f32 %v1074, 1.0
    %v1095 = vadd.f32 %v1076, 1.0
    %v1096 = vadd.f32 %v1078, 1.0
    %v1097 = vadd.f32 %v1080, 1.0
    %v1098 = vadd.f32 %v1082, 1.0
    %v1099 = vrcp.pop %v1083
    %v1100 = vmul.f32 1.0, %v1099
    %v1101 = vrcp.pop %v1084
    %v1102 = vmul.f32 1.0, %v1101
    %v1103 = vrcp.pop %v1085
    %v1104 = vmul.f32 1.0, %v1103
    %v1105 = vrcp.pop %v1086
    %v1106 = vmul.f32 1.0, %v1105
    %v1107 = vrcp.pop %v1087
    %v1108 = vmul.f32 1.0, %v1107
    %v1109 = vrcp.pop %v1088
    %v1110 = vmul.f32 1.0, %v1109
    %v1111 = vrcp.pop %v1089
    %v1112 = vmul.f32 1.0, %v1111
    %v1113 = vrcp.pop %v1090
    %v1114 = vmul.f32 1.0, %v1113
    %v1115 = vrcp.pop %v1091
    %v1116 = vmul.f32 1.0, %v1115
    %v1117 = vrcp.pop %v1092
    %v1118 = vmul.f32 1.0, %v1117
    %v1119 = vrcp.pop %v1093
    %v1120 = vmul.f32 1.0, %v1119
    %v1121 = vrcp.pop %v1094
    %v1122 = vmul.f32 1.0, %v1121
    %v1123 = vrcp.pop %v1095
    %v1124 = vmul.f32 1.0, %v1123
    %v1125 = vrcp.pop %v1096
    %v1126 = vmul.f32 1.0, %v1125
    %v1127 = vrcp.pop %v1097
    %v1128 = vmul.f32 1.0, %v1127
    %v1129 = vrcp.pop %v1098
    %v1130 = vmul.f32 1.0, %v1129
    %v1131 = vpack.c.bf16 %v1102, %v1100
    %v1132 = vpack.c.bf16 %v1106, %v1104
    %v1133 = vpack.c.bf16 %v1110, %v1108
    %v1134 = vpack.c.bf16 %v1114, %v1112
    %v1135 = vpack.c.bf16 %v1118, %v1116
    %v1136 = vpack.c.bf16 %v1122, %v1120
    %v1137 = vpack.c.bf16 %v1126, %v1124
    %v1138 = vpack.c.bf16 %v1130, %v1128
    %v1139 = vld [vmem:[%s9] sm:$0xf]
    %v1140 = vld [vmem:[%s9 + $0x4] sm:$0xf]
    %v1141 = vld [vmem:[%s9 + $0x8] sm:$0xf]
    %v1142 = vld [vmem:[%s9 + $0xc] sm:$0xf]
    %v1143 = vld [vmem:[%s9 + $0x10] sm:$0xf]
    %v1144 = vld [vmem:[%s9 + $0x14] sm:$0xf]
    %v1145 = vld [vmem:[%s9 + $0x18] sm:$0xf]
    %v1146 = vld [vmem:[%s9 + $0x1c] sm:$0xf]
    %v1147 = vld [vmem:[%s9 + $0x20] sm:$0xf]
    %v1148 = vld [vmem:[%s9 + $0x24] sm:$0xf]
    %v1149 = vld [vmem:[%s9 + $0x28] sm:$0xf]
    %v1150 = vld [vmem:[%s9 + $0x2c] sm:$0xf]
    %v1151 = vld [vmem:[%s9 + $0x30] sm:$0xf]
    %v1152 = vld [vmem:[%s9 + $0x34] sm:$0xf]
    %v1153 = vld [vmem:[%s9 + $0x38] sm:$0xf]
    %v1154 = vld [vmem:[%s9 + $0x3c] sm:$0xf]
    %v1155 = vld [vmem:[%s10] sm:$0x1]
    %v1157 = vlaneseq
    %v1158 = vshrl.u32 %v1157, 7
    %v1159 = vsub.s32 0, %v1158
    %v1160 = vrot.slane %v1155, %v1159
    %v1178 = vunpack.c.l.b16 %v1139
    %v1179 = vunpack.c.l.b16 %v1140
    %v1180 = vunpack.c.l.b16 %v1141
    %v1181 = vunpack.c.l.b16 %v1142
    %v1182 = vunpack.c.l.b16 %v1143
    %v1183 = vunpack.c.l.b16 %v1144
    %v1184 = vunpack.c.l.b16 %v1145
    %v1185 = vunpack.c.l.b16 %v1146
    %v1186 = vunpack.c.l.b16 %v1147
    %v1187 = vunpack.c.l.b16 %v1148
    %v1188 = vunpack.c.l.b16 %v1149
    %v1189 = vunpack.c.l.b16 %v1150
    %v1190 = vunpack.c.l.b16 %v1151
    %v1191 = vunpack.c.l.b16 %v1152
    %v1192 = vunpack.c.l.b16 %v1153
    %v1193 = vunpack.c.l.b16 %v1154
    %v1194 = vpack.c.b16 %v1179, %v1178
    %v1195 = vpack.c.b16 %v1181, %v1180
    %v1196 = vpack.c.b16 %v1183, %v1182
    %v1197 = vpack.c.b16 %v1185, %v1184
    %v1198 = vpack.c.b16 %v1187, %v1186
    %v1199 = vpack.c.b16 %v1189, %v1188
    %v1200 = vpack.c.b16 %v1191, %v1190
    %v1201 = vpack.c.b16 %v1193, %v1192
    %1210 = vmatprep.subr.bf16.mxu0 0
    %1211 = vmatpush1.bf16.msra.mxu0 %v1194
    %1212 = vmatprep.subr.bf16.mxu0 0
    %1213 = vmatpush1.bf16.msra.mxu0 %v1195
    %1214 = vmatprep.subr.bf16.mxu0 0
    %1215 = vmatpush1.bf16.msra.mxu0 %v1196
    %1216 = vmatprep.subr.bf16.mxu0 0
    %1217 = vmatpush1.bf16.msra.mxu0 %v1197
    %1218 = vmatprep.subr.bf16.mxu0 0
    %1219 = vmatpush1.bf16.msra.mxu0 %v1198
    %1220 = vmatprep.subr.bf16.mxu0 0
    %1221 = vmatpush1.bf16.msra.mxu0 %v1199
    %1222 = vmatprep.subr.bf16.mxu0 0
    %1223 = vmatpush1.bf16.msra.mxu0 %v1200
    %1224 = vmatprep.subr.bf16.mxu0 0
    %1225 = vmatpush1.bf16.msra.mxu0 %v1201
    %1226 = vmatprep.subr.bf16.mxu0 0
    %1227 = vmatpush1.bf16.msra.mxu0 0
    %1228 = vmatprep.subr.bf16.mxu0 0
    %1229 = vmatpush1.bf16.msra.mxu0 0
    %1230 = vmatprep.subr.bf16.mxu0 0
    %1231 = vmatpush1.bf16.msra.mxu0 0
    %1232 = vmatprep.subr.bf16.mxu0 0
    %1233 = vmatpush1.bf16.msra.mxu0 0
    %1234 = vmatprep.subr.bf16.mxu0 0
    %1235 = vmatpush1.bf16.msra.mxu0 0
    %1236 = vmatprep.subr.bf16.mxu0 0
    %1237 = vmatpush1.bf16.msra.mxu0 0
    %1238 = vmatprep.subr.bf16.mxu0 0
    %1239 = vmatpush1.bf16.msra.mxu0 0
    %1240 = vmatprep.subr.bf16.mxu0 0
    %1241 = vmatpush1.bf16.msra.mxu0 0
    %1242 = vmatprep.mubr.bf16.mxu0 0
    %1243 = vmatmul.mubr.bf16.gmra.mrb[0].mxu0 %v1131
    %v1244 = vpop.f32.mrb[0].mxu0
    %v1245 = vadd.f32 %v1160, %v1244
    %v1246 = vpop.f32.mrb[0].mxu0
    %v1247 = vpop.f32.mrb[0].mxu0
    %v1248 = vadd.f32 %v1160, %v1247
    %v1249 = vpop.f32.mrb[0].mxu0
    %1250 = vmatprep.mubr.bf16.mxu0 0
    %1251 = vmatmul.mubr.bf16.gmra.mrb[0].mxu0 %v1132
    %v1252 = vpop.f32.mrb[0].mxu0
    %v1253 = vadd.f32 %v1160, %v1252
    %v1254 = vpop.f32.mrb[0].mxu0
    %v1255 = vpop.f32.mrb[0].mxu0
    %v1256 = vadd.f32 %v1160, %v1255
    %v1257 = vpop.f32.mrb[0].mxu0
    %1258 = vmatprep.mubr.bf16.mxu0 0
    %1259 = vmatmul.mubr.bf16.gmra.mrb[0].mxu0 %v1133
    %v1260 = vpop.f32.mrb[0].mxu0
    %v1261 = vadd.f32 %v1160, %v1260
    %v1262 = vpop.f32.mrb[0].mxu0
    %v1263 = vpop.f32.mrb[0].mxu0
    %v1264 = vadd.f32 %v1160, %v1263
    %v1265 = vpop.f32.mrb[0].mxu0
    %1266 = vmatprep.mubr.bf16.mxu0 0
    %1267 = vmatmul.mubr.bf16.gmra.mrb[0].mxu0 %v1134
    %v1268 = vpop.f32.mrb[0].mxu0
    %v1269 = vadd.f32 %v1160, %v1268
    %v1270 = vpop.f32.mrb[0].mxu0
    %v1271 = vpop.f32.mrb[0].mxu0
    %v1272 = vadd.f32 %v1160, %v1271
    %v1273 = vpop.f32.mrb[0].mxu0
    %1274 = vmatprep.mubr.bf16.mxu0 0
    %1275 = vmatmul.mubr.bf16.gmra.mrb[0].mxu0 %v1135
    %v1276 = vpop.f32.mrb[0].mxu0
    %v1277 = vadd.f32 %v1160, %v1276
    %v1278 = vpop.f32.mrb[0].mxu0
    %v1279 = vpop.f32.mrb[0].mxu0
    %v1280 = vadd.f32 %v1160, %v1279
    %v1281 = vpop.f32.mrb[0].mxu0
    %1282 = vmatprep.mubr.bf16.mxu0 0
    %1283 = vmatmul.mubr.bf16.gmra.mrb[0].mxu0 %v1136
    %v1284 = vpop.f32.mrb[0].mxu0
    %v1285 = vadd.f32 %v1160, %v1284
    %v1286 = vpop.f32.mrb[0].mxu0
    %v1287 = vpop.f32.mrb[0].mxu0
    %v1288 = vadd.f32 %v1160, %v1287
    %v1289 = vpop.f32.mrb[0].mxu0
    %1290 = vmatprep.mubr.bf16.mxu0 0
    %1291 = vmatmul.mubr.bf16.gmra.mrb[0].mxu0 %v1137
    %v1292 = vpop.f32.mrb[0].mxu0
    %v1293 = vadd.f32 %v1160, %v1292
    %v1294 = vpop.f32.mrb[0].mxu0
    %v1295 = vpop.f32.mrb[0].mxu0
    %v1296 = vadd.f32 %v1160, %v1295
    %v1297 = vpop.f32.mrb[0].mxu0
    %1298 = vmatprep.mubr.bf16.mxu0 0
    %1299 = vmatmul.mubr.bf16.gmra.mrb[0].mxu0 %v1138
    %v1300 = vpop.f32.mrb[0].mxu0
    %v1301 = vadd.f32 %v1160, %v1300
    %v1302 = vpop.f32.mrb[0].mxu0
    %v1303 = vpop.f32.mrb[0].mxu0
    %v1304 = vadd.f32 %v1160, %v1303
    %v1305 = vpop.f32.mrb[0].mxu0
    %1306 = vdwg.mxu0
    %1307 = vst.msk [vmem:[%s11] sm:$0xff] %vm137, %v1245
    %1308 = vst.msk [vmem:[%s11 + $0x8] sm:$0xff] %vm137, %v1248
    %1309 = vst.msk [vmem:[%s11 + $0x10] sm:$0xff] %vm137, %v1253
    %1310 = vst.msk [vmem:[%s11 + $0x18] sm:$0xff] %vm137, %v1256
    %1311 = vst.msk [vmem:[%s11 + $0x20] sm:$0xff] %vm137, %v1261
    %1312 = vst.msk [vmem:[%s11 + $0x28] sm:$0xff] %vm137, %v1264
    %1313 = vst.msk [vmem:[%s11 + $0x30] sm:$0xff] %vm137, %v1269
    %1314 = vst.msk [vmem:[%s11 + $0x38] sm:$0xff] %vm137, %v1272
    %1315 = vst.msk [vmem:[%s11 + $0x40] sm:$0xff] %vm137, %v1277
    %1316 = vst.msk [vmem:[%s11 + $0x48] sm:$0xff] %vm137, %v1280
    %1317 = vst.msk [vmem:[%s11 + $0x50] sm:$0xff] %vm137, %v1285
    %1318 = vst.msk [vmem:[%s11 + $0x58] sm:$0xff] %vm137, %v1288
    %1319 = vst.msk [vmem:[%s11 + $0x60] sm:$0xff] %vm137, %v1293
    %1320 = vst.msk [vmem:[%s11 + $0x68] sm:$0xff] %vm137, %v1296
    %1321 = vst.msk [vmem:[%s11 + $0x70] sm:$0xff] %vm137, %v1301
    %1322 = vst.msk [vmem:[%s11 + $0x78] sm:$0xff] %vm137, %v1304
    // Predicated region
    $region54: #{tpu_custom_call.1} parent=1 // pred_check
      _
    $region55: #{tpu_custom_call.1} parent=1 // pred_check_branch
      %1324 = sbr.rel (0) target = $region57
    $region56: #{tpu_custom_call.1} parent=1 // pred_region
      _
    $region57: #{tpu_custom_call.1} parent=1 // pred_fallthru
      _
    // Predicated region
    $region58: #{tpu_custom_call.1} parent=1 // pred_check
      _
    $region59: #{tpu_custom_call.1} parent=1 // pred_check_branch
      %1326 = sbr.rel (0) target = $region61
    $region60: #{tpu_custom_call.1} parent=1 // pred_region
      _
    $region61: #{tpu_custom_call.1} parent=1 // pred_fallthru
      _
    %1327 = vsyncpa [#allocation3], 1
    %1328 = vsyncpa [#allocation5], 1

</llo_original>
